<compile_context>
chip_gen: v5e
topology: v5e:2x2
jax: 0.10.0
libtpu: 0.0.40
codegen_flags: <defaults>
</compile_context>

<pallas_src>
import functools
import math

import jax
import jax.numpy as jnp
from jax.experimental import pallas as pl
from jax.experimental.pallas import tpu as pltpu

_LANES = 128
_EPS = 1e-7
_SMOOTH = 0.0
# Fill for masked rows: tanh(-40) == -1 exactly in f32, so sigmoid == 0 exactly,
# and -80 <= 0 never flips the "any prediction positive" max-guard.
_NEG_FILL = -80.0
# ~8 MiB of combined (logits + targets) input bytes per grid step (per buffer).
_STEP_BYTES = 8 * 1024 * 1024
_VMEM_LIMIT = 32 * 1024 * 1024


def _jaccard_partials_kernel(x_ref, y_ref, out_ref, *,
                             rows_valid, y_is_float, apply_mask):
    """Per-block partial reductions for the binary Jaccard loss.

    Writes a (1, 4, lanes) slab:
      row 0: sum(sigmoid(x) * t)   intersection
      row 1: sum(sigmoid(x))       prediction mass
      row 2: sum(t)                target mass (also the empty-GT guard)
      row 3: max(x)                > 0 iff any hard prediction (sigmoid > 0.5)
    """
    x = x_ref[...].astype(jnp.float32)
    if y_is_float:
        # torch .long(): truncate toward zero, then back to f32.
        t = y_ref[...].astype(jnp.int32).astype(jnp.float32)
    else:
        t = y_ref[...].astype(jnp.float32)

    if apply_mask:
        # Last grid block may extend past the valid rows (boundary block reads
        # unspecified data); mask those rows out before any accumulation.
        row0 = pl.program_id(0) * x.shape[0]
        rid = row0 + jax.lax.broadcasted_iota(jnp.int32, x.shape, 0)
        ok = rid < rows_valid
        x = jnp.where(ok, x, _NEG_FILL)   # sigmoid(-80) == 0 exactly (tanh saturates)
        t = jnp.where(ok, t, 0.0)

    # Numerically robust sigmoid: tanh goes to the (otherwise idle) EUP slot.
    p = 0.5 * jnp.tanh(0.5 * x) + 0.5

    inter = jnp.sum(p * t, axis=0, keepdims=True)
    sum_p = jnp.sum(p, axis=0, keepdims=True)
    sum_t = jnp.sum(t, axis=0, keepdims=True)
    max_x = jnp.max(x, axis=0, keepdims=True)

    # Single (4, lanes) store per block (no masked sublane-slice stores, no
    # zero-filled spare rows).
    out_ref[0] = jnp.concatenate([inter, sum_p, sum_t, max_x], axis=0)


def _choose_block_rows(rows, per_row_bytes):
    """Row-tile size: ~_STEP_BYTES of combined input per step, multiple of 8,
    and >= 2 grid steps whenever possible (v7x megacore)."""
    if rows <= 8:
        return rows                                    # single full-extent block
    target = max(8, (_STEP_BYTES // per_row_bytes) // 8 * 8)
    half = (((rows + 1) // 2) + 7) // 8 * 8            # round_up(cdiv(rows,2), 8)
    return max(8, min(target, half))


def _ref_loss(y_hat, y):
    """Plain-JAX mirror of the PyTorch forward (also the pathological fallback)."""
    x = y_hat.astype(jnp.float32)
    if jnp.issubdtype(y.dtype, jnp.floating):
        t = y.astype(jnp.int32).astype(jnp.float32)
    else:
        t = y.astype(jnp.float32)
    p = jax.nn.sigmoid(x)
    inter = jnp.sum(p * t)
    union = jnp.sum(p) + jnp.sum(t) - inter
    score = (inter + _SMOOTH) / jnp.maximum(union + _SMOOTH, _EPS)
    loss = (1.0 - score) * (jnp.sum(t) > 0.0).astype(jnp.float32)
    both_empty = jnp.logical_and(jnp.all(x <= 0.0), jnp.all(t == 0.0))
    return jnp.where(both_empty, jnp.float32(0.0), loss)


def loss_jaccard(y_hat, y):
    """JaccardLoss(mode='binary', from_logits=True, smooth=0, eps=1e-7) plus the
    LossJaccard all-empty guard.  Assumes targets are non-negative after .long()
    (binary 0/1 masks), as the binary-mode loss requires."""
    assert y_hat.shape == y.shape, "y_hat and y must have the same shape"
    shape = y_hat.shape
    total = int(math.prod([int(d) for d in shape])) if len(shape) else 1

    if total == 0:
        return jnp.zeros((), jnp.float32)

    x_item = jnp.dtype(y_hat.dtype).itemsize
    y_item = jnp.dtype(y.dtype).itemsize

    # Pick a zero-copy 2-D view (rows, lanes). No padding / extra HBM pass ever.
    if total % _LANES == 0:
        lanes = _LANES
        rows = total // _LANES
    elif y_hat.ndim >= 2:
        lanes = int(shape[-1])                 # full last dim as the lane extent
        rows = total // lanes
    else:
        lanes = total
        rows = 1

    per_row_bytes = lanes * (x_item + y_item)
    if min(rows, 8) * per_row_bytes * 2 > 24 * 1024 * 1024:
        # TODO(synk): pathologically wide ragged last dim cannot be tiled into
        # VMEM without a reshaping copy; use the plain-XLA path for this shape.
        return _ref_loss(y_hat, y)

    x2 = y_hat.reshape(rows, lanes)
    y2 = y.reshape(rows, lanes)

    br = _choose_block_rows(rows, per_row_bytes)
    nblocks = pl.cdiv(rows, br)
    ragged = (rows % br) != 0

    kernel = functools.partial(
        _jaccard_partials_kernel,
        rows_valid=rows,
        y_is_float=bool(jnp.issubdtype(y.dtype, jnp.floating)),
        apply_mask=ragged,
    )

    partials = pl.pallas_call(
        kernel,
        out_shape=jax.ShapeDtypeStruct((nblocks, 4, lanes), jnp.float32),
        grid_spec=pltpu.PrefetchScalarGridSpec(
            num_scalar_prefetch=0,
            grid=(nblocks,),
            in_specs=[
                pl.BlockSpec((br, lanes), lambda i: (i, 0)),
                pl.BlockSpec((br, lanes), lambda i: (i, 0)),
            ],
            out_specs=pl.BlockSpec((1, 4, lanes), lambda i: (i, 0, 0)),
        ),
        compiler_params=pltpu.CompilerParams(
            dimension_semantics=("parallel",),         # megacore-shardable map
            vmem_limit_bytes=_VMEM_LIMIT,              # big tiles on v5e; safe on v7x
        ),
    )(x2, y2)

    # Tiny epilogue in plain JAX.
    sums = jnp.sum(partials[:, 0:3, :], axis=(0, 2))   # (3,)
    inter, sum_p, sum_t = sums[0], sums[1], sums[2]
    max_x = jnp.max(partials[:, 3, :])

    union = (sum_p + sum_t) - inter
    score = (inter + _SMOOTH) / jnp.maximum(union + _SMOOTH, _EPS)
    loss = (1.0 - score) * (sum_t > 0.0).astype(jnp.float32)
    # module-level special case: all hard predictions zero and all targets zero.
    both_empty = jnp.logical_and(max_x <= 0.0, sum_t == 0.0)
    return jnp.where(both_empty, jnp.float32(0.0), loss)


if __name__ == "__main__":
    key = jax.random.PRNGKey(0)

    def run_check(shape, k):
        k1, k2 = jax.random.split(k)
        y_hat = jax.random.normal(k1, shape, jnp.float32)
        y = (jax.random.uniform(k2, shape) > 0.5).astype(jnp.float32)
        out = jax.block_until_ready(loss_jaccard(y_hat, y))
        ref = jax.block_until_ready(_ref_loss(y_hat, y))
        assert jnp.allclose(out, ref, atol=1e-5, rtol=1e-4), (shape, out, ref)
        return out

    k = key
    k, s1 = jax.random.split(k)
    run_check((2, 1, 16, 16), s1)     # 128-aligned, single full-extent block
    k, s2 = jax.random.split(k)
    run_check((1, 1, 64, 128), s2)    # 128-aligned, 2 parallel blocks (no masking)
    k, s3 = jax.random.split(k)
    run_check((2, 1, 18, 18), s3)     # ragged total -> last-dim lanes + masked tail block

    # special case: all predictions and all ground truth empty -> exactly 0.0
    shape = (2, 1, 16, 16)
    out0 = jax.block_until_ready(
        loss_jaccard(jnp.full(shape, -5.0, jnp.float32), jnp.zeros(shape, jnp.float32)))
    assert float(out0) == 0.0, out0

    print("KERNEL_OK")
</pallas_src>

<mosaic_0001>
module attributes {stable_mosaic.version = 11 : i64} {
  func.func @_jaccard_partials_kernel(%arg0: i32, %arg1: memref<4x128xf32, #tpu.memory_space<vmem>>, %arg2: memref<4x128xf32, #tpu.memory_space<vmem>>, %arg3: memref<1x4x128xf32, #tpu.memory_space<vmem>>) attributes {dimension_semantics = [#tpu.dimension_semantics<parallel>], iteration_bounds = array<i64: 1>, scalar_prefetch = 0 : i64, scratch_operands = 0 : i64, tpu.core_type = #tpu.core_type<tc>, window_params = [{transform_indices = @transform_0, window_bounds = array<i64: 4, 128>}, {transform_indices = @transform_1, window_bounds = array<i64: 4, 128>}, {transform_indices = @transform_2, window_bounds = array<i64: 1, 4, 128>}]} {
    %c0 = arith.constant 0 : index
    %c0_0 = arith.constant 0 : index
    %0 = vector.load %arg1[%c0, %c0_0] : memref<4x128xf32, #tpu.memory_space<vmem>>, vector<4x128xf32>
    %c0_1 = arith.constant 0 : index
    %c0_2 = arith.constant 0 : index
    %1 = vector.load %arg2[%c0_1, %c0_2] : memref<4x128xf32, #tpu.memory_space<vmem>>, vector<4x128xf32>
    %2 = arith.fptosi %1 : vector<4x128xf32> to vector<4x128xi32>
    %3 = arith.sitofp %2 : vector<4x128xi32> to vector<4x128xf32>
    %cst = arith.constant 5.000000e-01 : f32
    %4 = vector.broadcast %cst : f32 to vector<4x128xf32>
    %5 = arith.mulf %4, %0 : vector<4x128xf32>
    %6 = math.tanh %5 : vector<4x128xf32>
    %cst_3 = arith.constant 5.000000e-01 : f32
    %7 = vector.broadcast %cst_3 : f32 to vector<4x128xf32>
    %8 = arith.mulf %7, %6 : vector<4x128xf32>
    %cst_4 = arith.constant 5.000000e-01 : f32
    %9 = vector.broadcast %cst_4 : f32 to vector<4x128xf32>
    %10 = arith.addf %8, %9 : vector<4x128xf32>
    %11 = arith.mulf %10, %3 : vector<4x128xf32>
    %cst_5 = arith.constant dense<0.000000e+00> : vector<128xf32>
    %12 = vector.multi_reduction <add>, %11, %cst_5 [0] : vector<4x128xf32> to vector<128xf32>
    %13 = vector.shape_cast %12 : vector<128xf32> to vector<1x128xf32>
    %cst_6 = arith.constant dense<0.000000e+00> : vector<128xf32>
    %14 = vector.multi_reduction <add>, %10, %cst_6 [0] : vector<4x128xf32> to vector<128xf32>
    %15 = vector.shape_cast %14 : vector<128xf32> to vector<1x128xf32>
    %cst_7 = arith.constant dense<0.000000e+00> : vector<128xf32>
    %16 = vector.multi_reduction <add>, %3, %cst_7 [0] : vector<4x128xf32> to vector<128xf32>
    %17 = vector.shape_cast %16 : vector<128xf32> to vector<1x128xf32>
    %cst_8 = arith.constant dense<0xFF800000> : vector<128xf32>
    %18 = vector.multi_reduction <maximumf>, %0, %cst_8 [0] : vector<4x128xf32> to vector<128xf32>
    %19 = vector.shape_cast %18 : vector<128xf32> to vector<1x128xf32>
    %20 = tpu.concatenate %13, %15, %17, %19 in 0 : vector<1x128xf32>, vector<1x128xf32>, vector<1x128xf32>, vector<1x128xf32> -> vector<4x128xf32>
    %c0_9 = arith.constant 0 : index
    %c0_10 = arith.constant 0 : index
    %c0_11 = arith.constant 0 : index
    %21 = vector.load %arg3[%c0_9, %c0_10, %c0_11] : memref<1x4x128xf32, #tpu.memory_space<vmem>>, vector<1x4x128xf32>
    %22 = vector.shape_cast %21 : vector<1x4x128xf32> to vector<4x128xf32>
    %23 = vector.shape_cast %20 : vector<4x128xf32> to vector<1x4x128xf32>
    tpu.vector_store %arg3[%c0_9, %c0_10, %c0_11], %23 {strides = array<i32>} : memref<1x4x128xf32, #tpu.memory_space<vmem>>, vector<1x4x128xf32>,
    return
  }
  func.func @transform_0(%arg0: i32) -> (i32, i32) {
    %c0_i32 = arith.constant 0 : i32
    %c0_i32_0 = arith.constant 0 : i32
    return %arg0, %c0_i32 : i32, i32
  }
  func.func @transform_1(%arg0: i32) -> (i32, i32) {
    %c0_i32 = arith.constant 0 : i32
    %c0_i32_0 = arith.constant 0 : i32
    return %arg0, %c0_i32 : i32, i32
  }
  func.func @transform_2(%arg0: i32) -> (i32, i32, i32) {
    %c0_i32 = arith.constant 0 : i32
    %c0_i32_0 = arith.constant 0 : i32
    %c0_i32_1 = arith.constant 0 : i32
    return %arg0, %c0_i32, %c0_i32_0 : i32, i32, i32
  }
}

</mosaic_0001>

<llo_original>
// kernel: tpu_custom_call.1
$region0: #{tpu_custom_call.1}
  #allocation0 [shape = 'u32[]', space=smem, size = 0x4, offset = 0x4, fixed_abs, tag = 'smem constant byte address 0x4 - core index']
  #allocation1 [shape = 'u32[72,128]{1,0:T(1,128)}', space=vmem, size = 0x9000, scoped, tag = 'internal scratch']
  %s0 = inlined_call_operand.hbm [shape: f32[4,128], index: 0, kind: input, shape index: {}]
  %s1 = inlined_call_operand.hbm [shape: f32[4,128], index: 1, kind: input, shape index: {}]
  %s2 = inlined_call_operand.hbm [shape: f32[1,4,128], index: 2, kind: output, shape index: {}]
  %s3 = sld [smem:[#allocation0]]
  $region26: #{tpu_custom_call.1} parent=0
    _
  %s5 = ssub.s32 1, %s3
  %s6 = scalar_select 0, %s5, %s3
  $region1: #{tpu_custom_call.1} parent=0
    #allocation2 [shape = 'u8[2048]{0}', space=vmem, size = 0x800, scoped, tag = 'input window, operand 0, single buffered']
    #allocation3 [shape = 's32[1]{0}', space=sflag, size = 0x4, scoped, tag = 'scoped memory for tpu_custom_call.1']
    #allocation4 [shape = 's32[1]{0}', space=sflag, size = 0x4, scoped, tag = 'scoped memory for tpu_custom_call.1']
    #allocation5 [shape = 'u8[2048]{0}', space=vmem, size = 0x800, scoped, tag = 'input window, operand 1, single buffered']
    #allocation6 [shape = 's32[1]{0}', space=sflag, size = 0x4, scoped, tag = 'scoped memory for tpu_custom_call.1']
    #allocation7 [shape = 'u8[2048]{0}', space=vmem, size = 0x800, scoped, tag = 'output window, operand 0, single buffered']
    %7 = vsyncpa [#allocation3], 0
    %8 = vsyncpa [#allocation6], 0
    %9 = vsyncpa [#allocation4], 0
    // Predicated region
    $region2: #{tpu_custom_call.1} parent=1 // pred_check
      _
    $region3: #{tpu_custom_call.1} parent=1 // pred_check_branch
      %11 = sbr.rel (0) target = $region5
    $region4: #{tpu_custom_call.1} parent=1 // pred_region
      %13 = vsyncadd [#allocation3], 0
      %s15 = sshll.u32 %s0, 4
      %s16 = int_to_ptr.hbm [resolvable:$true] %s15
      %s17 = sshll.u32 [#allocation2], 4
      %s18 = int_to_ptr.vmem [resolvable:$true] %s17
      %20 = dma.hbm_to_vmem [thread:$0]  %s16, 64, %s18, [#allocation3]
    $region5: #{tpu_custom_call.1} parent=1 // pred_fallthru
      _
    // Predicated region
    $region6: #{tpu_custom_call.1} parent=1 // pred_check
      _
    $region7: #{tpu_custom_call.1} parent=1 // pred_check_branch
      %22 = sbr.rel (0) target = $region9
    $region8: #{tpu_custom_call.1} parent=1 // pred_region
      %24 = vsyncadd [#allocation6], 0
      %s26 = sshll.u32 %s1, 4
      %s27 = int_to_ptr.hbm [resolvable:$true] %s26
      %s28 = sshll.u32 [#allocation5], 4
      %s29 = int_to_ptr.vmem [resolvable:$true] %s28
      %31 = dma.hbm_to_vmem [thread:$0]  %s27, 64, %s29, [#allocation6]
    $region9: #{tpu_custom_call.1} parent=1 // pred_fallthru
      _
    // Predicated region
    $region10: #{tpu_custom_call.1} parent=1 // pred_check
      _
    $region11: #{tpu_custom_call.1} parent=1 // pred_check_branch
      %33 = sbr.rel (0) target = $region13
    $region12: #{tpu_custom_call.1} parent=1 // pred_region
      %35 = dma.done [#allocation3], 64
    $region13: #{tpu_custom_call.1} parent=1 // pred_fallthru
      _
    // Predicated region
    $region14: #{tpu_custom_call.1} parent=1 // pred_check
      _
    $region15: #{tpu_custom_call.1} parent=1 // pred_check_branch
      %37 = sbr.rel (0) target = $region17
    $region16: #{tpu_custom_call.1} parent=1 // pred_region
      %39 = dma.done [#allocation6], 64
    $region17: #{tpu_custom_call.1} parent=1 // pred_fallthru
      _
    %v40 = vld [vmem:[#allocation2] sm:$0xf]
    %v41 = vld [vmem:[#allocation5] sm:$0xf]
    %v42 = vcvt.f32.s32.to.zero.pseudo %v41
    %v43 = vcvt.s32.f32 %v42
    %v44 = vmul.f32 %v40, 0.5
    %v45 = vtanh.pop %v44
    %v46 = vmul.f32 %v45, 0.5
    %v47 = vadd.f32 %v46, 0.5
    %v48 = vmul.f32 %v47, %v43
    %vm49 = vcmask 1043456
    %v50 = vsel %vm49, %v48, 0.0
    %v51 = vrot.slane %v50, 4
    %v52 = vadd.f32 %v50, %v51
    %v53 = vrot.slane %v52, 2
    %v54 = vadd.f32 %v52, %v53
    %v55 = vrot.slane %v54, 1
    %v56 = vadd.f32 %v54, %v55
    %v57 = vsel %vm49, %v47, 0.0
    %v58 = vrot.slane %v57, 4
    %v59 = vadd.f32 %v57, %v58
    %v60 = vrot.slane %v59, 2
    %v61 = vadd.f32 %v59, %v60
    %v62 = vrot.slane %v61, 1
    %v63 = vadd.f32 %v61, %v62
    %v64 = vsel %vm49, %v43, 0.0
    %v65 = vrot.slane %v64, 4
    %v66 = vadd.f32 %v64, %v65
    %v67 = vrot.slane %v66, 2
    %v68 = vadd.f32 %v66, %v67
    %v69 = vrot.slane %v68, 1
    %v70 = vadd.f32 %v68, %v69
    %v71 = vsel %vm49, %v40, -inf
    %v72 = vrot.slane %v71, 4
    %v73 = vmax.f32 %v71, %v72
    %v74 = vrot.slane %v73, 2
    %v75 = vmax.f32 %v73, %v74
    %v76 = vrot.slane %v75, 1
    %v77 = vmax.f32 %v75, %v76
    %vm78 = vcmask 1040384
    %v79 = vsel %vm78, %v56, %v63
    %vm80 = vcmask 1041408
    %v81 = vsel %vm80, %v79, %v70
    %vm82 = vcmask 1042432
    %v83 = vsel %vm82, %v81, %v77
    %84 = vst [vmem:[#allocation7] sm:$0xf] %v83
    // Predicated region
    $region18: #{tpu_custom_call.1} parent=1 // pred_check
      _
    $region19: #{tpu_custom_call.1} parent=1 // pred_check_branch
      %86 = sbr.rel (0) target = $region21
    $region20: #{tpu_custom_call.1} parent=1 // pred_region
      %88 = vsyncadd [#allocation4], 0
      %s90 = sshll.u32 [#allocation7], 4
      %s91 = int_to_ptr.vmem [resolvable:$true] %s90
      %s92 = sshll.u32 %s2, 4
      %s93 = int_to_ptr.hbm [resolvable:$true] %s92
      %95 = dma.vmem_to_hbm [thread:$0]  %s91, 64, %s93, [#allocation4]
    $region21: #{tpu_custom_call.1} parent=1 // pred_fallthru
      _
    // Predicated region
    $region22: #{tpu_custom_call.1} parent=1 // pred_check
      _
    $region23: #{tpu_custom_call.1} parent=1 // pred_check_branch
      %97 = sbr.rel (0) target = $region25
    $region24: #{tpu_custom_call.1} parent=1 // pred_region
      %99 = dma.done [#allocation4], 64
    $region25: #{tpu_custom_call.1} parent=1 // pred_fallthru
      _
    %100 = vsyncpa [#allocation3], 1
    %101 = vsyncpa [#allocation6], 1
    %102 = vsyncpa [#allocation4], 1

</llo_original>
